<compile_context>
chip_gen: v6e
topology: v6e:2x2x1
jax: 0.10.0
libtpu: 0.0.40
codegen_flags: <defaults>
</compile_context>

<pallas_src>
import functools

import jax
import jax.numpy as jnp
from jax import lax
from jax.experimental import pallas as pl
from jax.experimental.pallas import tpu as pltpu


# ---------------------------------------------------------------------------
# Fused kernel: everything (pool -> conv1 -> lrelu -> conv2 -> lrelu) in VMEM.
# ---------------------------------------------------------------------------
def _fused_down_kernel(xp_ref, mask_ref, w1_ref, b1_ref, w2_ref, b2_ref, o_ref,
                       *, KH, KW, Ho, Wo):
    # xp_ref  : (4, Cin, NS)        pool-tap-separated input, NS = N*Ho*Wo lanes
    # mask_ref: (KH*KW, NS)         0/1 boundary masks per conv tap (f32)
    # w1_ref  : (Cout, KH*KW*Cin)   conv1 weights, im2col (kh, kw, cin) order
    # b1_ref  : (Cout, 1)
    # w2_ref  : (Cout, KH*KW*Cout)  conv2 weights, im2col order
    # b2_ref  : (Cout, 1)
    # o_ref   : (Cout, NS)          lane-dense output
    NS = o_ref.shape[-1]
    p = (KH - 1) // 2

    # ---- 2x2 average pool on the VPU: 3 adds + 1 scale (no matmul). ----
    pooled = 0.25 * (xp_ref[0].astype(jnp.float32) + xp_ref[1].astype(jnp.float32)
                     + xp_ref[2].astype(jnp.float32) + xp_ref[3].astype(jnp.float32))
    # pooled: (Cin, NS), lane = n*Ho*Wo + y*Wo + x

    def conv_taps(act):
        # act: (C, NS) channel-major activation.
        # Returns the (KH*KW*C, NS) im2col patch matrix built with lane rolls
        # (XLU) + boundary masks (VPU) -- no sub-tile slices, no lane concats.
        taps = []
        for kh in range(KH):
            for kw in range(KW):
                s = (kh - p) * Wo + (kw - p)            # static lane shift
                t = act if s == 0 else pltpu.roll(act, shift=(-s) % NS, axis=1)
                if not (kh == p and kw == p):           # center tap: no mask
                    r = kh * KW + kw
                    t = t * mask_ref[r:r + 1, :]        # (1, NS) broadcast
                taps.append(t)
        return jnp.concatenate(taps, axis=0)            # sublane-axis concat

    # ---- conv1 ("same", stride 1) + leaky_relu(0.1): ONE MXU matmul,
    # channel-major (Cout, NS=128) output. ----
    p1 = conv_taps(pooled)                               # (KH*KW*Cin, NS)
    a1 = jnp.dot(w1_ref[...], p1,
                 preferred_element_type=jnp.float32) + b1_ref[...]
    a1 = jnp.maximum(a1, 0.1 * a1)                       # (Cout, NS)

    # ---- conv2 + leaky_relu(0.1): same structure. ----
    p2 = conv_taps(a1)                                   # (KH*KW*Cout, NS)
    a2 = jnp.dot(w2_ref[...], p2,
                 preferred_element_type=jnp.float32) + b2_ref[...]
    a2 = jnp.maximum(a2, 0.1 * a2)                       # (Cout, NS)

    o_ref[...] = a2.astype(o_ref.dtype)                  # unmasked 128-lane store


# ---------------------------------------------------------------------------
# `down` forward: NCHW in / NCHW out, exactly like the PyTorch module.
# ---------------------------------------------------------------------------
def down_forward(x_nchw, params):
    N, Cin, H, W = x_nchw.shape
    assert H % 2 == 0 and W % 2 == 0, "avg_pool2d(2) requires even H, W"
    w1_oihw = params["w1_oihw"]                  # (Cout, Cin, KH, KW)
    w2_oihw = params["w2_oihw"]                  # (Cout, Cout, KH, KW)
    Cout, wc, KH, KW = w1_oihw.shape
    assert wc == Cin
    assert KH == KW and KH % 2 == 1, "only odd 'same' filter sizes supported"
    p = (KH - 1) // 2
    Ho, Wo = H // 2, W // 2
    S = Ho * Wo
    NS = N * S
    assert NS % 128 == 0, (
        "this kernel assumes N*Ho*Wo is a multiple of 128 lanes; got %d" % NS)

    # Input layout prep (tiny 8 KiB transform, fused by XLA under jit):
    # xp[a*2+b, c, n*S + y*Wo + x] = x[n, c, 2y+a, 2x+b]
    xp = (x_nchw.reshape(N, Cin, Ho, 2, Wo, 2)
          .transpose(3, 5, 1, 0, 2, 4)
          .reshape(4, Cin, NS)
          .astype(jnp.float32))

    # Weight-side layout prep (weights only, constant-folded under jit):
    # row order of the patch matrix is (kh, kw, c).
    w1f = jnp.transpose(w1_oihw, (0, 2, 3, 1)).reshape(Cout, KH * KW * Cin)
    w1f = w1f.astype(jnp.float32)
    w2f = jnp.transpose(w2_oihw, (0, 2, 3, 1)).reshape(Cout, KH * KW * Cout)
    w2f = w2f.astype(jnp.float32)
    b1 = params["b1"].reshape(Cout, 1).astype(jnp.float32)
    b2 = params["b2"].reshape(Cout, 1).astype(jnp.float32)

    # Per-tap boundary masks over output lanes (constants under jit):
    # mask[t, l] = 1 iff the shifted source pixel is inside the pooled image.
    l = jnp.arange(NS)
    y = (l % S) // Wo
    x = l % Wo
    rows = []
    for kh in range(KH):
        for kw in range(KW):
            dy, dx = kh - p, kw - p
            ok = ((y + dy >= 0) & (y + dy < Ho) & (x + dx >= 0) & (x + dx < Wo))
            rows.append(ok)
    masks = jnp.stack(rows, axis=0).astype(jnp.float32)   # (KH*KW, NS)

    flops = 2 * NS * KH * KW * (Cout * Cin + Cout * Cout) + 4 * Cin * NS
    bytes_accessed = 4 * (xp.size + masks.size + w1f.size + w2f.size
                          + b1.size + b2.size + Cout * NS)

    kernel = functools.partial(_fused_down_kernel, KH=KH, KW=KW, Ho=Ho, Wo=Wo)
    out_flat = pl.pallas_call(
        kernel,
        out_shape=jax.ShapeDtypeStruct((Cout, NS), x_nchw.dtype),
        grid=(1,),
        in_specs=[
            pl.BlockSpec((4, Cin, NS), lambda i: (0, 0, 0)),
            pl.BlockSpec((KH * KW, NS), lambda i: (0, 0)),
            pl.BlockSpec((Cout, KH * KW * Cin), lambda i: (0, 0)),
            pl.BlockSpec((Cout, 1), lambda i: (0, 0)),
            pl.BlockSpec((Cout, KH * KW * Cout), lambda i: (0, 0)),
            pl.BlockSpec((Cout, 1), lambda i: (0, 0)),
        ],
        out_specs=pl.BlockSpec((Cout, NS), lambda i: (0, 0)),
        compiler_params=pltpu.CompilerParams(
            dimension_semantics=("arbitrary",)),
        cost_estimate=pl.CostEstimate(flops=flops, transcendentals=0,
                                      bytes_accessed=bytes_accessed),
    )(xp, masks, w1f, b1, w2f, b2)

    # (Cout, N*S) -> (N, Cout, Ho, Wo): tiny 4 KiB wrapper transpose.
    return out_flat.reshape(Cout, N, Ho, Wo).transpose(1, 0, 2, 3)


# Pure-JAX reference (correctness check only).
def down_reference(x_nchw, params):
    N, C, H, W = x_nchw.shape
    x = x_nchw.reshape(N, C, H // 2, 2, W // 2, 2).mean(axis=(3, 5))

    def conv(x, w_oihw, b):
        y = lax.conv_general_dilated(
            x, w_oihw, window_strides=(1, 1), padding="SAME",
            dimension_numbers=("NCHW", "OIHW", "NCHW"))
        return y + b.reshape(1, -1, 1, 1)

    y = conv(x, params["w1_oihw"], params["b1"])
    y = jnp.where(y >= 0, y, 0.1 * y)
    y = conv(y, params["w2_oihw"], params["b2"])
    y = jnp.where(y >= 0, y, 0.1 * y)
    return y


def init_params(key, in_channels, out_channels, filter_size):
    k1, k2, k3, k4 = jax.random.split(key, 4)
    w1 = 0.1 * jax.random.normal(
        k1, (out_channels, in_channels, filter_size, filter_size), jnp.float32)
    b1 = 0.1 * jax.random.normal(k2, (out_channels,), jnp.float32)
    w2 = 0.1 * jax.random.normal(
        k3, (out_channels, out_channels, filter_size, filter_size), jnp.float32)
    b2 = 0.1 * jax.random.normal(k4, (out_channels,), jnp.float32)
    return {"w1_oihw": w1, "b1": b1, "w2_oihw": w2, "b2": b2}


if __name__ == "__main__":
    key = jax.random.PRNGKey(0)
    kx, kp = jax.random.split(key)

    in_channels, out_channels, filter_size = 4, 8, 3
    N, H, W = 2, 16, 16

    x = jax.random.normal(kx, (N, in_channels, H, W), jnp.float32)   # NCHW
    params = init_params(kp, in_channels, out_channels, filter_size)

    out = jax.jit(down_forward)(x, params)
    out = jax.block_until_ready(out)

    ref = down_reference(x, params)
    assert out.shape == (N, out_channels, H // 2, W // 2), out.shape
    assert jnp.allclose(out, ref, rtol=2e-4, atol=2e-4), (
        "max abs diff = %e" % float(jnp.max(jnp.abs(out - ref))))

    print("KERNEL_OK")
</pallas_src>

<mosaic_0001>
module attributes {stable_mosaic.version = 11 : i64} {
  func.func @_fused_down_kernel(%arg0: i32, %arg1: memref<4x4x128xf32, #tpu.memory_space<vmem>>, %arg2: memref<9x128xf32, #tpu.memory_space<vmem>>, %arg3: memref<8x36xf32, #tpu.memory_space<vmem>>, %arg4: memref<8x1xf32, #tpu.memory_space<vmem>>, %arg5: memref<8x72xf32, #tpu.memory_space<vmem>>, %arg6: memref<8x1xf32, #tpu.memory_space<vmem>>, %arg7: memref<8x128xf32, #tpu.memory_space<vmem>>) attributes {dimension_semantics = [#tpu.dimension_semantics<arbitrary>], iteration_bounds = array<i64: 1>, scalar_prefetch = 0 : i64, scratch_operands = 0 : i64, tpu.core_type = #tpu.core_type<tc>, window_params = [{pipeline_mode = #tpu.pipeline_mode<synchronous>, transform_indices = @transform_0, window_bounds = array<i64: 4, 4, 128>}, {pipeline_mode = #tpu.pipeline_mode<synchronous>, transform_indices = @transform_1, window_bounds = array<i64: 9, 128>}, {pipeline_mode = #tpu.pipeline_mode<synchronous>, transform_indices = @transform_2, window_bounds = array<i64: 8, 36>}, {pipeline_mode = #tpu.pipeline_mode<synchronous>, transform_indices = @transform_3, window_bounds = array<i64: 8, 1>}, {pipeline_mode = #tpu.pipeline_mode<synchronous>, transform_indices = @transform_4, window_bounds = array<i64: 8, 72>}, {pipeline_mode = #tpu.pipeline_mode<synchronous>, transform_indices = @transform_5, window_bounds = array<i64: 8, 1>}, {pipeline_mode = #tpu.pipeline_mode<synchronous>, transform_indices = @transform_6, window_bounds = array<i64: 8, 128>}]} {
    %c0 = arith.constant 0 : index
    %c0_0 = arith.constant 0 : index
    %c0_1 = arith.constant 0 : index
    %0 = vector.load %arg1[%c0, %c0_0, %c0_1] : memref<4x4x128xf32, #tpu.memory_space<vmem>>, vector<1x4x128xf32>
    %1 = vector.shape_cast %0 : vector<1x4x128xf32> to vector<4x128xf32>
    %c1 = arith.constant 1 : index
    %c0_2 = arith.constant 0 : index
    %c0_3 = arith.constant 0 : index
    %2 = vector.load %arg1[%c1, %c0_2, %c0_3] : memref<4x4x128xf32, #tpu.memory_space<vmem>>, vector<1x4x128xf32>
    %3 = vector.shape_cast %2 : vector<1x4x128xf32> to vector<4x128xf32>
    %4 = arith.addf %1, %3 : vector<4x128xf32>
    %c2 = arith.constant 2 : index
    %c0_4 = arith.constant 0 : index
    %c0_5 = arith.constant 0 : index
    %5 = vector.load %arg1[%c2, %c0_4, %c0_5] : memref<4x4x128xf32, #tpu.memory_space<vmem>>, vector<1x4x128xf32>
    %6 = vector.shape_cast %5 : vector<1x4x128xf32> to vector<4x128xf32>
    %7 = arith.addf %4, %6 : vector<4x128xf32>
    %c3 = arith.constant 3 : index
    %c0_6 = arith.constant 0 : index
    %c0_7 = arith.constant 0 : index
    %8 = vector.load %arg1[%c3, %c0_6, %c0_7] : memref<4x4x128xf32, #tpu.memory_space<vmem>>, vector<1x4x128xf32>
    %9 = vector.shape_cast %8 : vector<1x4x128xf32> to vector<4x128xf32>
    %10 = arith.addf %7, %9 : vector<4x128xf32>
    %cst = arith.constant 2.500000e-01 : f32
    %11 = vector.broadcast %cst : f32 to vector<4x128xf32>
    %12 = arith.mulf %11, %10 : vector<4x128xf32>
    %c9_i32 = arith.constant 9 : i32
    %13 = tpu.dynamic_rotate %12 by %c9_i32 dim 1 : vector<4x128xf32>, i32 -> vector<4x128xf32>
    %c0_8 = arith.constant 0 : index
    %c0_9 = arith.constant 0 : index
    %14 = vector.load %arg2[%c0_8, %c0_9] : memref<9x128xf32, #tpu.memory_space<vmem>>, vector<1x128xf32>
    %15 = vector.broadcast %14 : vector<1x128xf32> to vector<4x128xf32>
    %16 = arith.mulf %13, %15 : vector<4x128xf32>
    %c8_i32 = arith.constant 8 : i32
    %17 = tpu.dynamic_rotate %12 by %c8_i32 dim 1 : vector<4x128xf32>, i32 -> vector<4x128xf32>
    %c1_10 = arith.constant 1 : index
    %c0_11 = arith.constant 0 : index
    %18 = vector.load %arg2[%c1_10, %c0_11] : memref<9x128xf32, #tpu.memory_space<vmem>>, vector<1x128xf32>
    %19 = vector.broadcast %18 : vector<1x128xf32> to vector<4x128xf32>
    %20 = arith.mulf %17, %19 : vector<4x128xf32>
    %c7_i32 = arith.constant 7 : i32
    %21 = tpu.dynamic_rotate %12 by %c7_i32 dim 1 : vector<4x128xf32>, i32 -> vector<4x128xf32>
    %c2_12 = arith.constant 2 : index
    %c0_13 = arith.constant 0 : index
    %22 = vector.load %arg2[%c2_12, %c0_13] : memref<9x128xf32, #tpu.memory_space<vmem>>, vector<1x128xf32>
    %23 = vector.broadcast %22 : vector<1x128xf32> to vector<4x128xf32>
    %24 = arith.mulf %21, %23 : vector<4x128xf32>
    %c1_i32 = arith.constant 1 : i32
    %25 = tpu.dynamic_rotate %12 by %c1_i32 dim 1 : vector<4x128xf32>, i32 -> vector<4x128xf32>
    %c3_14 = arith.constant 3 : index
    %c0_15 = arith.constant 0 : index
    %26 = vector.load %arg2[%c3_14, %c0_15] : memref<9x128xf32, #tpu.memory_space<vmem>>, vector<1x128xf32>
    %27 = vector.broadcast %26 : vector<1x128xf32> to vector<4x128xf32>
    %28 = arith.mulf %25, %27 : vector<4x128xf32>
    %c127_i32 = arith.constant 127 : i32
    %29 = tpu.dynamic_rotate %12 by %c127_i32 dim 1 : vector<4x128xf32>, i32 -> vector<4x128xf32>
    %c5 = arith.constant 5 : index
    %c0_16 = arith.constant 0 : index
    %30 = vector.load %arg2[%c5, %c0_16] : memref<9x128xf32, #tpu.memory_space<vmem>>, vector<1x128xf32>
    %31 = vector.broadcast %30 : vector<1x128xf32> to vector<4x128xf32>
    %32 = arith.mulf %29, %31 : vector<4x128xf32>
    %c121_i32 = arith.constant 121 : i32
    %33 = tpu.dynamic_rotate %12 by %c121_i32 dim 1 : vector<4x128xf32>, i32 -> vector<4x128xf32>
    %c6 = arith.constant 6 : index
    %c0_17 = arith.constant 0 : index
    %34 = vector.load %arg2[%c6, %c0_17] : memref<9x128xf32, #tpu.memory_space<vmem>>, vector<1x128xf32>
    %35 = vector.broadcast %34 : vector<1x128xf32> to vector<4x128xf32>
    %36 = arith.mulf %33, %35 : vector<4x128xf32>
    %c120_i32 = arith.constant 120 : i32
    %37 = tpu.dynamic_rotate %12 by %c120_i32 dim 1 : vector<4x128xf32>, i32 -> vector<4x128xf32>
    %c7 = arith.constant 7 : index
    %c0_18 = arith.constant 0 : index
    %38 = vector.load %arg2[%c7, %c0_18] : memref<9x128xf32, #tpu.memory_space<vmem>>, vector<1x128xf32>
    %39 = vector.broadcast %38 : vector<1x128xf32> to vector<4x128xf32>
    %40 = arith.mulf %37, %39 : vector<4x128xf32>
    %c119_i32 = arith.constant 119 : i32
    %41 = tpu.dynamic_rotate %12 by %c119_i32 dim 1 : vector<4x128xf32>, i32 -> vector<4x128xf32>
    %c8 = arith.constant 8 : index
    %c0_19 = arith.constant 0 : index
    %42 = vector.load %arg2[%c8, %c0_19] : memref<9x128xf32, #tpu.memory_space<vmem>>, vector<1x128xf32>
    %43 = vector.broadcast %42 : vector<1x128xf32> to vector<4x128xf32>
    %44 = arith.mulf %41, %43 : vector<4x128xf32>
    %45 = tpu.concatenate %16, %20, %24, %28, %12, %32, %36, %40, %44 in 0 : vector<4x128xf32>, vector<4x128xf32>, vector<4x128xf32>, vector<4x128xf32>, vector<4x128xf32>, vector<4x128xf32>, vector<4x128xf32>, vector<4x128xf32>, vector<4x128xf32> -> vector<36x128xf32>
    %c0_20 = arith.constant 0 : index
    %c0_21 = arith.constant 0 : index
    %46 = vector.load %arg3[%c0_20, %c0_21] : memref<8x36xf32, #tpu.memory_space<vmem>>, vector<8x36xf32>
    %cst_22 = arith.constant dense<0.000000e+00> : vector<8x128xf32>
    %47 = tpu.matmul %46, %45, %cst_22 {dimension_numbers = #tpu.dot_dimension_numbers<[1], [0], [0], [1], [0, 0, 1, 1], [], []>} : vector<8x36xf32>, vector<36x128xf32>, vector<8x128xf32> -> vector<8x128xf32>
    %c0_23 = arith.constant 0 : index
    %c0_24 = arith.constant 0 : index
    %48 = vector.load %arg4[%c0_23, %c0_24] : memref<8x1xf32, #tpu.memory_space<vmem>>, vector<8x1xf32>
    %49 = vector.broadcast %48 : vector<8x1xf32> to vector<8x128xf32>
    %50 = arith.addf %47, %49 : vector<8x128xf32>
    %cst_25 = arith.constant 1.000000e-01 : f32
    %51 = vector.broadcast %cst_25 : f32 to vector<8x128xf32>
    %52 = arith.mulf %51, %50 : vector<8x128xf32>
    %53 = arith.maximumf %50, %52 : vector<8x128xf32>
    %c9_i32_26 = arith.constant 9 : i32
    %54 = tpu.dynamic_rotate %53 by %c9_i32_26 dim 1 : vector<8x128xf32>, i32 -> vector<8x128xf32>
    %c0_27 = arith.constant 0 : index
    %c0_28 = arith.constant 0 : index
    %55 = vector.load %arg2[%c0_27, %c0_28] : memref<9x128xf32, #tpu.memory_space<vmem>>, vector<1x128xf32>
    %56 = vector.broadcast %55 : vector<1x128xf32> to vector<8x128xf32>
    %57 = arith.mulf %54, %56 : vector<8x128xf32>
    %c8_i32_29 = arith.constant 8 : i32
    %58 = tpu.dynamic_rotate %53 by %c8_i32_29 dim 1 : vector<8x128xf32>, i32 -> vector<8x128xf32>
    %c1_30 = arith.constant 1 : index
    %c0_31 = arith.constant 0 : index
    %59 = vector.load %arg2[%c1_30, %c0_31] : memref<9x128xf32, #tpu.memory_space<vmem>>, vector<1x128xf32>
    %60 = vector.broadcast %59 : vector<1x128xf32> to vector<8x128xf32>
    %61 = arith.mulf %58, %60 : vector<8x128xf32>
    %c7_i32_32 = arith.constant 7 : i32
    %62 = tpu.dynamic_rotate %53 by %c7_i32_32 dim 1 : vector<8x128xf32>, i32 -> vector<8x128xf32>
    %c2_33 = arith.constant 2 : index
    %c0_34 = arith.constant 0 : index
    %63 = vector.load %arg2[%c2_33, %c0_34] : memref<9x128xf32, #tpu.memory_space<vmem>>, vector<1x128xf32>
    %64 = vector.broadcast %63 : vector<1x128xf32> to vector<8x128xf32>
    %65 = arith.mulf %62, %64 : vector<8x128xf32>
    %c1_i32_35 = arith.constant 1 : i32
    %66 = tpu.dynamic_rotate %53 by %c1_i32_35 dim 1 : vector<8x128xf32>, i32 -> vector<8x128xf32>
    %c3_36 = arith.constant 3 : index
    %c0_37 = arith.constant 0 : index
    %67 = vector.load %arg2[%c3_36, %c0_37] : memref<9x128xf32, #tpu.memory_space<vmem>>, vector<1x128xf32>
    %68 = vector.broadcast %67 : vector<1x128xf32> to vector<8x128xf32>
    %69 = arith.mulf %66, %68 : vector<8x128xf32>
    %c127_i32_38 = arith.constant 127 : i32
    %70 = tpu.dynamic_rotate %53 by %c127_i32_38 dim 1 : vector<8x128xf32>, i32 -> vector<8x128xf32>
    %c5_39 = arith.constant 5 : index
    %c0_40 = arith.constant 0 : index
    %71 = vector.load %arg2[%c5_39, %c0_40] : memref<9x128xf32, #tpu.memory_space<vmem>>, vector<1x128xf32>
    %72 = vector.broadcast %71 : vector<1x128xf32> to vector<8x128xf32>
    %73 = arith.mulf %70, %72 : vector<8x128xf32>
    %c121_i32_41 = arith.constant 121 : i32
    %74 = tpu.dynamic_rotate %53 by %c121_i32_41 dim 1 : vector<8x128xf32>, i32 -> vector<8x128xf32>
    %c6_42 = arith.constant 6 : index
    %c0_43 = arith.constant 0 : index
    %75 = vector.load %arg2[%c6_42, %c0_43] : memref<9x128xf32, #tpu.memory_space<vmem>>, vector<1x128xf32>
    %76 = vector.broadcast %75 : vector<1x128xf32> to vector<8x128xf32>
    %77 = arith.mulf %74, %76 : vector<8x128xf32>
    %c120_i32_44 = arith.constant 120 : i32
    %78 = tpu.dynamic_rotate %53 by %c120_i32_44 dim 1 : vector<8x128xf32>, i32 -> vector<8x128xf32>
    %c7_45 = arith.constant 7 : index
    %c0_46 = arith.constant 0 : index
    %79 = vector.load %arg2[%c7_45, %c0_46] : memref<9x128xf32, #tpu.memory_space<vmem>>, vector<1x128xf32>
    %80 = vector.broadcast %79 : vector<1x128xf32> to vector<8x128xf32>
    %81 = arith.mulf %78, %80 : vector<8x128xf32>
    %c119_i32_47 = arith.constant 119 : i32
    %82 = tpu.dynamic_rotate %53 by %c119_i32_47 dim 1 : vector<8x128xf32>, i32 -> vector<8x128xf32>
    %c8_48 = arith.constant 8 : index
    %c0_49 = arith.constant 0 : index
    %83 = vector.load %arg2[%c8_48, %c0_49] : memref<9x128xf32, #tpu.memory_space<vmem>>, vector<1x128xf32>
    %84 = vector.broadcast %83 : vector<1x128xf32> to vector<8x128xf32>
    %85 = arith.mulf %82, %84 : vector<8x128xf32>
    %86 = tpu.concatenate %57, %61, %65, %69, %53, %73, %77, %81, %85 in 0 : vector<8x128xf32>, vector<8x128xf32>, vector<8x128xf32>, vector<8x128xf32>, vector<8x128xf32>, vector<8x128xf32>, vector<8x128xf32>, vector<8x128xf32>, vector<8x128xf32> -> vector<72x128xf32>
    %c0_50 = arith.constant 0 : index
    %c0_51 = arith.constant 0 : index
    %87 = vector.load %arg5[%c0_50, %c0_51] : memref<8x72xf32, #tpu.memory_space<vmem>>, vector<8x72xf32>
    %cst_52 = arith.constant dense<0.000000e+00> : vector<8x128xf32>
    %88 = tpu.matmul %87, %86, %cst_52 {dimension_numbers = #tpu.dot_dimension_numbers<[1], [0], [0], [1], [0, 0, 1, 1], [], []>} : vector<8x72xf32>, vector<72x128xf32>, vector<8x128xf32> -> vector<8x128xf32>
    %c0_53 = arith.constant 0 : index
    %c0_54 = arith.constant 0 : index
    %89 = vector.load %arg6[%c0_53, %c0_54] : memref<8x1xf32, #tpu.memory_space<vmem>>, vector<8x1xf32>
    %90 = vector.broadcast %89 : vector<8x1xf32> to vector<8x128xf32>
    %91 = arith.addf %88, %90 : vector<8x128xf32>
    %cst_55 = arith.constant 1.000000e-01 : f32
    %92 = vector.broadcast %cst_55 : f32 to vector<8x128xf32>
    %93 = arith.mulf %92, %91 : vector<8x128xf32>
    %94 = arith.maximumf %91, %93 : vector<8x128xf32>
    %c0_56 = arith.constant 0 : index
    %c0_57 = arith.constant 0 : index
    %95 = vector.load %arg7[%c0_56, %c0_57] : memref<8x128xf32, #tpu.memory_space<vmem>>, vector<8x128xf32>
    tpu.vector_store %arg7[%c0_56, %c0_57], %94 {strides = array<i32>} : memref<8x128xf32, #tpu.memory_space<vmem>>, vector<8x128xf32>,
    return
  }
  func.func @transform_0(%arg0: i32) -> (i32, i32, i32) {
    %c0_i32 = arith.constant 0 : i32
    %c0_i32_0 = arith.constant 0 : i32
    %c0_i32_1 = arith.constant 0 : i32
    %c0_i32_2 = arith.constant 0 : i32
    return %c0_i32, %c0_i32_0, %c0_i32_1 : i32, i32, i32
  }
  func.func @transform_1(%arg0: i32) -> (i32, i32) {
    %c0_i32 = arith.constant 0 : i32
    %c0_i32_0 = arith.constant 0 : i32
    %c0_i32_1 = arith.constant 0 : i32
    return %c0_i32, %c0_i32_0 : i32, i32
  }
  func.func @transform_2(%arg0: i32) -> (i32, i32) {
    %c0_i32 = arith.constant 0 : i32
    %c0_i32_0 = arith.constant 0 : i32
    %c0_i32_1 = arith.constant 0 : i32
    return %c0_i32, %c0_i32_0 : i32, i32
  }
  func.func @transform_3(%arg0: i32) -> (i32, i32) {
    %c0_i32 = arith.constant 0 : i32
    %c0_i32_0 = arith.constant 0 : i32
    %c0_i32_1 = arith.constant 0 : i32
    return %c0_i32, %c0_i32_0 : i32, i32
  }
  func.func @transform_4(%arg0: i32) -> (i32, i32) {
    %c0_i32 = arith.constant 0 : i32
    %c0_i32_0 = arith.constant 0 : i32
    %c0_i32_1 = arith.constant 0 : i32
    return %c0_i32, %c0_i32_0 : i32, i32
  }
  func.func @transform_5(%arg0: i32) -> (i32, i32) {
    %c0_i32 = arith.constant 0 : i32
    %c0_i32_0 = arith.constant 0 : i32
    %c0_i32_1 = arith.constant 0 : i32
    return %c0_i32, %c0_i32_0 : i32, i32
  }
  func.func @transform_6(%arg0: i32) -> (i32, i32) {
    %c0_i32 = arith.constant 0 : i32
    %c0_i32_0 = arith.constant 0 : i32
    %c0_i32_1 = arith.constant 0 : i32
    return %c0_i32, %c0_i32_0 : i32, i32
  }
}

</mosaic_0001>

<llo_original>
// kernel: down_forward.1
$region0: #{down_forward.1}
  #allocation0 [shape = 'u32[]', space=smem, size = 0x4, offset = 0x4, fixed_abs, tag = 'smem constant byte address 0x4 - core index']
  #allocation1 [shape = 'u32[144,128]{1,0:T(1,128)}', space=vmem, size = 0x12000, scoped, tag = 'internal scratch']
  %s0 = inlined_call_operand.vmem [shape: f32[4,4,128], index: 0, kind: input, shape index: {}]
  %s1 = inlined_call_operand.vmem [shape: f32[9,128], index: 1, kind: input, shape index: {}]
  %s2 = inlined_call_operand.vmem [shape: f32[8,36], index: 2, kind: input, shape index: {}]
  %s3 = inlined_call_operand.vmem [shape: f32[8,1], index: 3, kind: input, shape index: {}]
  %s4 = inlined_call_operand.vmem [shape: f32[8,72], index: 4, kind: input, shape index: {}]
  %s5 = inlined_call_operand.vmem [shape: f32[8,1], index: 5, kind: input, shape index: {}]
  %s6 = inlined_call_operand.vmem [shape: f32[8,128], index: 6, kind: output, shape index: {}]
  %s7 = sld [smem:[#allocation0]]
  $region34: #{down_forward.1} parent=0
    _
  %s9 = ssub.s32 1, %s7
  %s10 = scalar_select 0, %s9, %s7
  // Predicated region
  $region2: #{down_forward.1} parent=0 // pred_check
    _
  $region3: #{down_forward.1} parent=0 // pred_check_branch
    %12 = sbr.rel (0) target = $region5
  $region4: #{down_forward.1} parent=0 // pred_region
    _
  $region5: #{down_forward.1} parent=0 // pred_fallthru
    _
  // Predicated region
  $region6: #{down_forward.1} parent=0 // pred_check
    _
  $region7: #{down_forward.1} parent=0 // pred_check_branch
    %14 = sbr.rel (0) target = $region9
  $region8: #{down_forward.1} parent=0 // pred_region
    _
  $region9: #{down_forward.1} parent=0 // pred_fallthru
    _
  // Predicated region
  $region10: #{down_forward.1} parent=0 // pred_check
    _
  $region11: #{down_forward.1} parent=0 // pred_check_branch
    %16 = sbr.rel (0) target = $region13
  $region12: #{down_forward.1} parent=0 // pred_region
    _
  $region13: #{down_forward.1} parent=0 // pred_fallthru
    _
  // Predicated region
  $region14: #{down_forward.1} parent=0 // pred_check
    _
  $region15: #{down_forward.1} parent=0 // pred_check_branch
    %18 = sbr.rel (0) target = $region17
  $region16: #{down_forward.1} parent=0 // pred_region
    _
  $region17: #{down_forward.1} parent=0 // pred_fallthru
    _
  // Predicated region
  $region18: #{down_forward.1} parent=0 // pred_check
    _
  $region19: #{down_forward.1} parent=0 // pred_check_branch
    %20 = sbr.rel (0) target = $region21
  $region20: #{down_forward.1} parent=0 // pred_region
    _
  $region21: #{down_forward.1} parent=0 // pred_fallthru
    _
  // Predicated region
  $region22: #{down_forward.1} parent=0 // pred_check
    _
  $region23: #{down_forward.1} parent=0 // pred_check_branch
    %22 = sbr.rel (0) target = $region25
  $region24: #{down_forward.1} parent=0 // pred_region
    _
  $region25: #{down_forward.1} parent=0 // pred_fallthru
    _
  %v23 = vld [vmem:[%s0] sm:$0xf]
  %s24 = scalar_lea.vmem %s0, 4
  %v25 = vld [vmem:[%s24] sm:$0xf]
  %v26 = vadd.f32 %v23, %v25
  %s27 = scalar_lea.vmem %s0, 8
  %v28 = vld [vmem:[%s27] sm:$0xf]
  %v29 = vadd.f32 %v26, %v28
  %s30 = scalar_lea.vmem %s0, 12
  %v31 = vld [vmem:[%s30] sm:$0xf]
  %v32 = vadd.f32 %v29, %v31
  %v33 = vmul.f32 %v32, 0.25
  %34 = vrot.lane.b32.xlu0 %v33, 9
  %v35 = vpop.permute.xlu0 %34
  %v36 = vld [vmem:[%s1] sm:$0x1]
  %v37 = vlaneseq
  %v38 = vshrl.u32 %v37, 7
  %v39 = vsub.s32 0, %v38
  %v40 = vrot.slane %v36, %v39
  %v41 = vmul.f32 %v35, %v40
  %42 = vrot.lane.b32.xlu0 %v33, 8
  %v43 = vpop.permute.xlu0 %42
  %v44 = vld [vmem:[%s1 + $0x1] sm:$0x1]
  %v45 = vlaneseq
  %v46 = vshrl.u32 %v45, 7
  %v47 = vsub.s32 0, %v46
  %v48 = vrot.slane %v44, %v47
  %v49 = vmul.f32 %v43, %v48
  %50 = vrot.lane.b32.xlu0 %v33, 7
  %v51 = vpop.permute.xlu0 %50
  %v52 = vld [vmem:[%s1 + $0x2] sm:$0x1]
  %v53 = vlaneseq
  %v54 = vshrl.u32 %v53, 7
  %v55 = vsub.s32 0, %v54
  %v56 = vrot.slane %v52, %v55
  %v57 = vmul.f32 %v51, %v56
  %58 = vrot.lane.b32.xlu0 %v33, 1
  %v59 = vpop.permute.xlu0 %58
  %v60 = vld [vmem:[%s1 + $0x3] sm:$0x1]
  %v61 = vlaneseq
  %v62 = vshrl.u32 %v61, 7
  %v63 = vsub.s32 0, %v62
  %v64 = vrot.slane %v60, %v63
  %v65 = vmul.f32 %v59, %v64
  %66 = vrot.lane.b32.xlu0 %v33, 127
  %v67 = vpop.permute.xlu0 %66
  %v68 = vld [vmem:[%s1 + $0x5] sm:$0x1]
  %v69 = vlaneseq
  %v70 = vshrl.u32 %v69, 7
  %v71 = vsub.s32 0, %v70
  %v72 = vrot.slane %v68, %v71
  %v73 = vmul.f32 %v67, %v72
  %74 = vrot.lane.b32.xlu0 %v33, 121
  %v75 = vpop.permute.xlu0 %74
  %v76 = vld [vmem:[%s1 + $0x6] sm:$0x1]
  %v77 = vlaneseq
  %v78 = vshrl.u32 %v77, 7
  %v79 = vsub.s32 0, %v78
  %v80 = vrot.slane %v76, %v79
  %v81 = vmul.f32 %v75, %v80
  %82 = vrot.lane.b32.xlu0 %v33, 120
  %v83 = vpop.permute.xlu0 %82
  %v84 = vld [vmem:[%s1 + $0x7] sm:$0x1]
  %v85 = vlaneseq
  %v86 = vshrl.u32 %v85, 7
  %v87 = vsub.s32 0, %v86
  %v88 = vrot.slane %v84, %v87
  %v89 = vmul.f32 %v83, %v88
  %90 = vrot.lane.b32.xlu0 %v33, 119
  %v91 = vpop.permute.xlu0 %90
  %v92 = vld [vmem:[%s1 + $0x8] sm:$0x1]
  %v93 = vlaneseq
  %v94 = vshrl.u32 %v93, 7
  %v95 = vsub.s32 0, %v94
  %v96 = vrot.slane %v92, %v95
  %v97 = vmul.f32 %v91, %v96
  %v99 = vrot.slane %v49, 4
  %v102 = vrot.slane %v65, 4
  %v105 = vrot.slane %v73, 4
  %v108 = vrot.slane %v89, 4
  %vm110 = vcmask 1043456
  %v111 = vsel %vm110, %v41, %v99
  %v112 = vsel %vm110, %v57, %v102
  %v113 = vsel %vm110, %v33, %v105
  %v114 = vsel %vm110, %v81, %v108
  %v115 = vld [vmem:[%s2] sm:$0xff]
  %v116 = vld [vmem:[%s3] sm:$0xff]
  %118 = vset.pattern.permute.xlu0 0
  %119 = vperm.xlu0 %118, %v116
  %v120 = vpop.permute.xlu0 %119
  %vm122 = vcmask 293888
  %v124 = vsel %vm122, %v115, 0
  %v127 = vsel %vm110, %v97, 0
  %129 = vmatprep.subr.mxu0 0.0
  %130 = vmatpush1.msra.mxu0 0.0
  %131 = vmatprep.subr.mxu0 0.0
  %132 = vmatpush1.msra.mxu0 0.0
  %133 = vmatprep.subr.mxu0 0.0
  %134 = vmatpush1.msra.mxu0 0.0
  %135 = vmatprep.subr.mxu0 0.0
  %136 = vmatpush1.msra.mxu0 0.0
  %137 = vmatprep.subr.mxu0 0.0
  %138 = vmatpush1.msra.mxu0 0.0
  %139 = vmatprep.subr.mxu0 0.0
  %140 = vmatpush1.msra.mxu0 0.0
  %141 = vmatprep.subr.mxu0 0.0
  %142 = vmatpush1.msra.mxu0 0.0
  %143 = vmatprep.subr.mxu0 0.0
  %144 = vmatpush1.msra.mxu0 0.0
  %145 = vmatprep.subr.mxu0 0.0
  %146 = vmatpush1.msra.mxu0 0.0
  %147 = vmatprep.subr.mxu0 0.0
  %148 = vmatpush1.msra.mxu0 0.0
  %149 = vmatprep.subr.mxu0 0.0
  %150 = vmatpush1.msra.mxu0 0.0
  %151 = vmatprep.subr.mxu0 0.0
  %152 = vmatpush1.msra.mxu0 %v127
  %153 = vmatprep.subr.mxu0 0.0
  %154 = vmatpush1.msra.mxu0 %v114
  %155 = vmatprep.subr.mxu0 0.0
  %156 = vmatpush1.msra.mxu0 %v113
  %157 = vmatprep.subr.mxu0 0.0
  %158 = vmatpush1.msra.mxu0 %v112
  %159 = vmatprep.subr.mxu0 0.0
  %160 = vmatpush1.msra.mxu0 %v111
  %161 = vmatprep.subr.mxu0 0.0
  %162 = vmatpush2.msra.mxu0 0.0
  %163 = vmatprep.subr.mxu0 0.0
  %164 = vmatpush2.msra.mxu0 0.0
  %165 = vmatprep.subr.mxu0 0.0
  %166 = vmatpush2.msra.mxu0 0.0
  %167 = vmatprep.subr.mxu0 0.0
  %168 = vmatpush2.msra.mxu0 0.0
  %169 = vmatprep.subr.mxu0 0.0
  %170 = vmatpush2.msra.mxu0 0.0
  %171 = vmatprep.subr.mxu0 0.0
  %172 = vmatpush2.msra.mxu0 0.0
  %173 = vmatprep.subr.mxu0 0.0
  %174 = vmatpush2.msra.mxu0 0.0
  %175 = vmatprep.subr.mxu0 0.0
  %176 = vmatpush2.msra.mxu0 0.0
  %177 = vmatprep.subr.mxu0 0.0
  %178 = vmatpush2.msra.mxu0 0.0
  %179 = vmatprep.subr.mxu0 0.0
  %180 = vmatpush2.msra.mxu0 0.0
  %181 = vmatprep.subr.mxu0 0.0
  %182 = vmatpush2.msra.mxu0 0.0
  %183 = vmatprep.subr.mxu0 0.0
  %184 = vmatpush2.msra.mxu0 0.0
  %185 = vmatprep.subr.mxu0 0.0
  %186 = vmatpush2.msra.mxu0 0.0
  %187 = vmatprep.subr.mxu0 0.0
  %188 = vmatpush2.msra.mxu0 0.0
  %189 = vmatprep.subr.mxu0 0.0
  %190 = vmatpush2.msra.mxu0 0.0
  %191 = vmatprep.subr.mxu0 0.0
  %192 = vmatpush2.msra.mxu0 0.0
  %193 = vmatprep.mubr.f32.mxu0 0.0
  %194 = vmatmul.mubr.f32.gmra.mxu0 %v124
  %v195 = vpop.f32.mrf.mxu0
  %v196 = vadd.f32 %v120, %v195
  %v197 = vpop.f32.mrf.mxu0
  %198 = vdwg.mxu0
  %v199 = vmul.f32 %v196, 0.1
  %v200 = vmax.f32 %v196, %v199
  %201 = vrot.lane.b32.xlu0 %v200, 9
  %v202 = vpop.permute.xlu0 %201
  %v203 = vmul.f32 %v202, %v40
  %204 = vrot.lane.b32.xlu0 %v200, 8
  %v205 = vpop.permute.xlu0 %204
  %v206 = vmul.f32 %v205, %v48
  %207 = vrot.lane.b32.xlu0 %v200, 7
  %v208 = vpop.permute.xlu0 %207
  %v209 = vmul.f32 %v208, %v56
  %210 = vrot.lane.b32.xlu0 %v200, 1
  %v211 = vpop.permute.xlu0 %210
  %v212 = vmul.f32 %v211, %v64
  %213 = vrot.lane.b32.xlu0 %v200, 127
  %v214 = vpop.permute.xlu0 %213
  %v215 = vmul.f32 %v214, %v72
  %216 = vrot.lane.b32.xlu0 %v200, 121
  %v217 = vpop.permute.xlu0 %216
  %v218 = vmul.f32 %v217, %v80
  %219 = vrot.lane.b32.xlu0 %v200, 120
  %v220 = vpop.permute.xlu0 %219
  %v221 = vmul.f32 %v220, %v88
  %222 = vrot.lane.b32.xlu0 %v200, 119
  %v223 = vpop.permute.xlu0 %222
  %v224 = vmul.f32 %v223, %v96
  %v225 = vld [vmem:[%s4] sm:$0xff]
  %v226 = vld [vmem:[%s5] sm:$0xff]
  %228 = vset.pattern.permute.xlu0 0
  %229 = vperm.xlu0 %228, %v226
  %v230 = vpop.permute.xlu0 %229
  %vm232 = vcmask 588800
  %v234 = vsel %vm232, %v225, 0
  %236 = vmatprep.subr.mxu0 0.0
  %237 = vmatpush1.msra.mxu0 0.0
  %238 = vmatprep.subr.mxu0 0.0
  %239 = vmatpush1.msra.mxu0 0.0
  %240 = vmatprep.subr.mxu0 0.0
  %241 = vmatpush1.msra.mxu0 0.0
  %242 = vmatprep.subr.mxu0 0.0
  %243 = vmatpush1.msra.mxu0 0.0
  %244 = vmatprep.subr.mxu0 0.0
  %245 = vmatpush1.msra.mxu0 0.0
  %246 = vmatprep.subr.mxu0 0.0
  %247 = vmatpush1.msra.mxu0 0.0
  %248 = vmatprep.subr.mxu0 0.0
  %249 = vmatpush1.msra.mxu0 0.0
  %250 = vmatprep.subr.mxu0 0.0
  %251 = vmatpush1.msra.mxu0 %v224
  %252 = vmatprep.subr.mxu0 0.0
  %253 = vmatpush1.msra.mxu0 %v221
  %254 = vmatprep.subr.mxu0 0.0
  %255 = vmatpush1.msra.mxu0 %v218
  %256 = vmatprep.subr.mxu0 0.0
  %257 = vmatpush1.msra.mxu0 %v215
  %258 = vmatprep.subr.mxu0 0.0
  %259 = vmatpush1.msra.mxu0 %v200
  %260 = vmatprep.subr.mxu0 0.0
  %261 = vmatpush1.msra.mxu0 %v212
  %262 = vmatprep.subr.mxu0 0.0
  %263 = vmatpush1.msra.mxu0 %v209
  %264 = vmatprep.subr.mxu0 0.0
  %265 = vmatpush1.msra.mxu0 %v206
  %266 = vmatprep.subr.mxu0 0.0
  %267 = vmatpush1.msra.mxu0 %v203
  %268 = vmatprep.subr.mxu0 0.0
  %269 = vmatpush2.msra.mxu0 0.0
  %270 = vmatprep.subr.mxu0 0.0
  %271 = vmatpush2.msra.mxu0 0.0
  %272 = vmatprep.subr.mxu0 0.0
  %273 = vmatpush2.msra.mxu0 0.0
  %274 = vmatprep.subr.mxu0 0.0
  %275 = vmatpush2.msra.mxu0 0.0
  %276 = vmatprep.subr.mxu0 0.0
  %277 = vmatpush2.msra.mxu0 0.0
  %278 = vmatprep.subr.mxu0 0.0
  %279 = vmatpush2.msra.mxu0 0.0
  %280 = vmatprep.subr.mxu0 0.0
  %281 = vmatpush2.msra.mxu0 0.0
  %282 = vmatprep.subr.mxu0 0.0
  %283 = vmatpush2.msra.mxu0 0.0
  %284 = vmatprep.subr.mxu0 0.0
  %285 = vmatpush2.msra.mxu0 0.0
  %286 = vmatprep.subr.mxu0 0.0
  %287 = vmatpush2.msra.mxu0 0.0
  %288 = vmatprep.subr.mxu0 0.0
  %289 = vmatpush2.msra.mxu0 0.0
  %290 = vmatprep.subr.mxu0 0.0
  %291 = vmatpush2.msra.mxu0 0.0
  %292 = vmatprep.subr.mxu0 0.0
  %293 = vmatpush2.msra.mxu0 0.0
  %294 = vmatprep.subr.mxu0 0.0
  %295 = vmatpush2.msra.mxu0 0.0
  %296 = vmatprep.subr.mxu0 0.0
  %297 = vmatpush2.msra.mxu0 0.0
  %298 = vmatprep.subr.mxu0 0.0
  %299 = vmatpush2.msra.mxu0 0.0
  %300 = vmatprep.mubr.f32.mxu0 0.0
  %301 = vmatmul.mubr.f32.gmra.mxu0 %v234
  %v302 = vpop.f32.mrf.mxu0
  %v303 = vadd.f32 %v230, %v302
  %v304 = vpop.f32.mrf.mxu0
  %305 = vdwg.mxu0
  %v306 = vmul.f32 %v303, 0.1
  %v307 = vmax.f32 %v303, %v306
  %308 = vst [vmem:[%s6] sm:$0xff] %v307
  // Predicated region
  $region26: #{down_forward.1} parent=0 // pred_check
    _
  $region27: #{down_forward.1} parent=0 // pred_check_branch
    %310 = sbr.rel (0) target = $region29
  $region28: #{down_forward.1} parent=0 // pred_region
    _
  $region29: #{down_forward.1} parent=0 // pred_fallthru
    _
  // Predicated region
  $region30: #{down_forward.1} parent=0 // pred_check
    _
  $region31: #{down_forward.1} parent=0 // pred_check_branch
    %312 = sbr.rel (0) target = $region33
  $region32: #{down_forward.1} parent=0 // pred_region
    _
  $region33: #{down_forward.1} parent=0 // pred_fallthru
    _

</llo_original>
